<compile_context>
chip_gen: v7x
topology: tpu7x:2x2x1
jax: 0.10.0
libtpu: 0.0.40
codegen_flags: <defaults>
</compile_context>

<pallas_src>
import jax
import jax.numpy as jnp
from jax.experimental import pallas as pl
from jax.experimental.pallas import tpu as pltpu

SPLIT_SIZE = 512              # hard-coded in SplitModule.forward
TARGET_CONCURRENT_DMAS = 8    # stripe chunks until ~this many descriptors in flight
MAX_OUTSTANDING = 16          # rolling-window bound on outstanding DMAs / sem slots
_ROW_TILE = 8                 # (8, 128) sublane tile: keep DMA row extents 8-aligned

_HBM = pltpu.MemorySpace.HBM


def _round_up(x, m):
    return (x + m - 1) // m * m


def split_dim0(x, split_size=SPLIT_SIZE):
    """Pallas equivalent of torch.Tensor.split(split_size, dim=0)."""
    N = x.shape[0]
    trailing = x.shape[1:]

    chunk_starts = list(range(0, N, split_size))
    chunk_sizes = [min(split_size, N - s) for s in chunk_starts]
    num_chunks = len(chunk_starts)

    # Pad a ragged (non multiple-of-8-rows) chunk's *allocation* so the
    # destination buffer stays (8,128)-tile aligned; sliced back below.
    alloc_sizes = [sz if sz % _ROW_TILE == 0 else _round_up(sz, _ROW_TILE)
                   for sz in chunk_sizes]

    # Stripe each chunk into several contiguous 8-row-aligned sub-copies so
    # that, with only 2-4 chunks, enough DMA descriptors are in flight to
    # saturate HBM bandwidth.  No benefit once there are already >= ~8 chunks.
    if num_chunks >= TARGET_CONCURRENT_DMAS:
        stripes_per_chunk = 1
    else:
        stripes_per_chunk = -(-TARGET_CONCURRENT_DMAS // num_chunks)  # ceil

    # Static copy plan: (chunk_idx, src_row, dst_row, rows).
    # TODO(synk): for hundreds+ of chunks, batch the full-size chunks into one
    # stacked descriptor to keep trace/compile time flat (bandwidth identical).
    copy_plan = []
    for c, (start, size) in enumerate(zip(chunk_starts, chunk_sizes)):
        base = _round_up(-(-size // stripes_per_chunk), _ROW_TILE)
        off = 0
        while off < size:
            rows = min(base, size - off)
            copy_plan.append((c, start + off, off, rows))
            off += rows

    total_copies = len(copy_plan)
    num_sems = min(total_copies, MAX_OUTSTANDING)

    def kernel(x_hbm, *rest):
        out_refs = rest[:num_chunks]
        (sem,) = rest[num_chunks:]
        pending = [None] * num_sems  # rolling window of outstanding copies
        for idx, (c, src_row, dst_row, rows) in enumerate(copy_plan):
            slot = idx % num_sems
            if pending[slot] is not None:
                pending[slot].wait()  # bound outstanding DMAs / reuse sem slot
            cp = pltpu.make_async_copy(
                x_hbm.at[pl.ds(src_row, rows)],        # rows [src, src+rows)
                out_refs[c].at[pl.ds(dst_row, rows)],  # HBM -> HBM, no VMEM hop
                sem.at[slot],
            )
            cp.start()
            pending[slot] = cp
        for cp in pending:
            if cp is not None:
                cp.wait()

    out_shapes = tuple(
        jax.ShapeDtypeStruct((sz,) + trailing, x.dtype) for sz in alloc_sizes
    )

    nbytes = x.size * x.dtype.itemsize
    outs = pl.pallas_call(
        kernel,
        out_shape=out_shapes,
        in_specs=[pl.BlockSpec(memory_space=_HBM)],
        out_specs=tuple(pl.BlockSpec(memory_space=_HBM) for _ in alloc_sizes),
        scratch_shapes=[pltpu.SemaphoreType.DMA((num_sems,))],
        cost_estimate=pl.CostEstimate(
            flops=0, transcendentals=0, bytes_accessed=2 * nbytes),
        compiler_params=pltpu.CompilerParams(has_side_effects=True),
    )(x)

    if not isinstance(outs, (list, tuple)):
        outs = (outs,)
    # Slice any padded ragged chunk back to its true size (no-op otherwise).
    outs = tuple(o if o.shape[0] == sz else o[:sz]
                 for o, sz in zip(outs, chunk_sizes))
    return outs


if __name__ == "__main__":
    key = jax.random.PRNGKey(0)
    # Split size is hard-coded to 512, so dim 0 must exceed 512 for a
    # non-trivial split; N=1280 exercises the unequal last chunk (512,512,256)
    # while keeping everything (8,128)-tile aligned and the total small.
    N, D = 1280, 256
    x = jax.random.normal(key, (N, D), dtype=jnp.float32)

    outs = split_dim0(x)
    outs = jax.block_until_ready(outs)

    # Reference: plain slicing, matching torch.split(512, dim=0).
    refs = tuple(x[i: i + SPLIT_SIZE] for i in range(0, N, SPLIT_SIZE))

    assert len(outs) == len(refs)
    for o, r in zip(outs, refs):
        assert o.shape == r.shape and o.dtype == r.dtype
        assert jnp.array_equal(o, r)

    print("KERNEL_OK")
</pallas_src>

<mosaic_0001>
module attributes {stable_mosaic.version = 11 : i64} {
  func.func @kernel(%arg0: memref<1280x256xf32, #tpu.memory_space<hbm>>, %arg1: memref<512x256xf32, #tpu.memory_space<hbm>>, %arg2: memref<512x256xf32, #tpu.memory_space<hbm>>, %arg3: memref<256x256xf32, #tpu.memory_space<hbm>>, %arg4: memref<9x!tpu.dma_semaphore, #tpu.memory_space<semaphore_mem>>) attributes {dimension_semantics = [], scalar_prefetch = 0 : i64, scratch_operands = 1 : i64, tpu.core_type = #tpu.core_type<tc>} {
    %c0_i32 = arith.constant 0 : i32
    %c0_i32_0 = arith.constant 0 : i32
    %c0_i32_1 = arith.constant 0 : i32
    %0 = tpu.memref_slice %arg0[%c0_i32_0, %c0_i32_1] : memref<1280x256xf32, #tpu.memory_space<hbm>> -> memref<176x256xf32, #tpu.memory_space<hbm>>
    %c0_i32_2 = arith.constant 0 : i32
    %c0_i32_3 = arith.constant 0 : i32
    %1 = tpu.memref_slice %arg1[%c0_i32_2, %c0_i32_3] : memref<512x256xf32, #tpu.memory_space<hbm>> -> memref<176x256xf32, #tpu.memory_space<hbm>>
    %2 = tpu.memref_slice %arg4[%c0_i32] : memref<9x!tpu.dma_semaphore, #tpu.memory_space<semaphore_mem>> -> memref<1x!tpu.dma_semaphore, #tpu.memory_space<semaphore_mem>>
    %3 = tpu.memref_squeeze %2 : memref<1x!tpu.dma_semaphore, #tpu.memory_space<semaphore_mem>> -> memref<!tpu.dma_semaphore, #tpu.memory_space<semaphore_mem>>
    tpu.enqueue_dma source(%0 : memref<176x256xf32, #tpu.memory_space<hbm>>) target(%1 : memref<176x256xf32, #tpu.memory_space<hbm>>) target_semaphore(%3 : memref<!tpu.dma_semaphore, #tpu.memory_space<semaphore_mem>>)
    %c1_i32 = arith.constant 1 : i32
    %c176_i32 = arith.constant 176 : i32
    %c0_i32_4 = arith.constant 0 : i32
    %4 = tpu.memref_slice %arg0[%c176_i32, %c0_i32_4] : memref<1280x256xf32, #tpu.memory_space<hbm>> -> memref<176x256xf32, #tpu.memory_space<hbm>>
    %c176_i32_5 = arith.constant 176 : i32
    %c0_i32_6 = arith.constant 0 : i32
    %5 = tpu.memref_slice %arg1[%c176_i32_5, %c0_i32_6] : memref<512x256xf32, #tpu.memory_space<hbm>> -> memref<176x256xf32, #tpu.memory_space<hbm>>
    %6 = tpu.memref_slice %arg4[%c1_i32] : memref<9x!tpu.dma_semaphore, #tpu.memory_space<semaphore_mem>> -> memref<1x!tpu.dma_semaphore, #tpu.memory_space<semaphore_mem>>
    %7 = tpu.memref_squeeze %6 : memref<1x!tpu.dma_semaphore, #tpu.memory_space<semaphore_mem>> -> memref<!tpu.dma_semaphore, #tpu.memory_space<semaphore_mem>>
    tpu.enqueue_dma source(%4 : memref<176x256xf32, #tpu.memory_space<hbm>>) target(%5 : memref<176x256xf32, #tpu.memory_space<hbm>>) target_semaphore(%7 : memref<!tpu.dma_semaphore, #tpu.memory_space<semaphore_mem>>)
    %c2_i32 = arith.constant 2 : i32
    %c352_i32 = arith.constant 352 : i32
    %c0_i32_7 = arith.constant 0 : i32
    %8 = tpu.memref_slice %arg0[%c352_i32, %c0_i32_7] : memref<1280x256xf32, #tpu.memory_space<hbm>> -> memref<160x256xf32, #tpu.memory_space<hbm>>
    %c352_i32_8 = arith.constant 352 : i32
    %c0_i32_9 = arith.constant 0 : i32
    %9 = tpu.memref_slice %arg1[%c352_i32_8, %c0_i32_9] : memref<512x256xf32, #tpu.memory_space<hbm>> -> memref<160x256xf32, #tpu.memory_space<hbm>>
    %10 = tpu.memref_slice %arg4[%c2_i32] : memref<9x!tpu.dma_semaphore, #tpu.memory_space<semaphore_mem>> -> memref<1x!tpu.dma_semaphore, #tpu.memory_space<semaphore_mem>>
    %11 = tpu.memref_squeeze %10 : memref<1x!tpu.dma_semaphore, #tpu.memory_space<semaphore_mem>> -> memref<!tpu.dma_semaphore, #tpu.memory_space<semaphore_mem>>
    tpu.enqueue_dma source(%8 : memref<160x256xf32, #tpu.memory_space<hbm>>) target(%9 : memref<160x256xf32, #tpu.memory_space<hbm>>) target_semaphore(%11 : memref<!tpu.dma_semaphore, #tpu.memory_space<semaphore_mem>>)
    %c3_i32 = arith.constant 3 : i32
    %c512_i32 = arith.constant 512 : i32
    %c0_i32_10 = arith.constant 0 : i32
    %12 = tpu.memref_slice %arg0[%c512_i32, %c0_i32_10] : memref<1280x256xf32, #tpu.memory_space<hbm>> -> memref<176x256xf32, #tpu.memory_space<hbm>>
    %c0_i32_11 = arith.constant 0 : i32
    %c0_i32_12 = arith.constant 0 : i32
    %13 = tpu.memref_slice %arg2[%c0_i32_11, %c0_i32_12] : memref<512x256xf32, #tpu.memory_space<hbm>> -> memref<176x256xf32, #tpu.memory_space<hbm>>
    %14 = tpu.memref_slice %arg4[%c3_i32] : memref<9x!tpu.dma_semaphore, #tpu.memory_space<semaphore_mem>> -> memref<1x!tpu.dma_semaphore, #tpu.memory_space<semaphore_mem>>
    %15 = tpu.memref_squeeze %14 : memref<1x!tpu.dma_semaphore, #tpu.memory_space<semaphore_mem>> -> memref<!tpu.dma_semaphore, #tpu.memory_space<semaphore_mem>>
    tpu.enqueue_dma source(%12 : memref<176x256xf32, #tpu.memory_space<hbm>>) target(%13 : memref<176x256xf32, #tpu.memory_space<hbm>>) target_semaphore(%15 : memref<!tpu.dma_semaphore, #tpu.memory_space<semaphore_mem>>)
    %c4_i32 = arith.constant 4 : i32
    %c688_i32 = arith.constant 688 : i32
    %c0_i32_13 = arith.constant 0 : i32
    %16 = tpu.memref_slice %arg0[%c688_i32, %c0_i32_13] : memref<1280x256xf32, #tpu.memory_space<hbm>> -> memref<176x256xf32, #tpu.memory_space<hbm>>
    %c176_i32_14 = arith.constant 176 : i32
    %c0_i32_15 = arith.constant 0 : i32
    %17 = tpu.memref_slice %arg2[%c176_i32_14, %c0_i32_15] : memref<512x256xf32, #tpu.memory_space<hbm>> -> memref<176x256xf32, #tpu.memory_space<hbm>>
    %18 = tpu.memref_slice %arg4[%c4_i32] : memref<9x!tpu.dma_semaphore, #tpu.memory_space<semaphore_mem>> -> memref<1x!tpu.dma_semaphore, #tpu.memory_space<semaphore_mem>>
    %19 = tpu.memref_squeeze %18 : memref<1x!tpu.dma_semaphore, #tpu.memory_space<semaphore_mem>> -> memref<!tpu.dma_semaphore, #tpu.memory_space<semaphore_mem>>
    tpu.enqueue_dma source(%16 : memref<176x256xf32, #tpu.memory_space<hbm>>) target(%17 : memref<176x256xf32, #tpu.memory_space<hbm>>) target_semaphore(%19 : memref<!tpu.dma_semaphore, #tpu.memory_space<semaphore_mem>>)
    %c5_i32 = arith.constant 5 : i32
    %c864_i32 = arith.constant 864 : i32
    %c0_i32_16 = arith.constant 0 : i32
    %20 = tpu.memref_slice %arg0[%c864_i32, %c0_i32_16] : memref<1280x256xf32, #tpu.memory_space<hbm>> -> memref<160x256xf32, #tpu.memory_space<hbm>>
    %c352_i32_17 = arith.constant 352 : i32
    %c0_i32_18 = arith.constant 0 : i32
    %21 = tpu.memref_slice %arg2[%c352_i32_17, %c0_i32_18] : memref<512x256xf32, #tpu.memory_space<hbm>> -> memref<160x256xf32, #tpu.memory_space<hbm>>
    %22 = tpu.memref_slice %arg4[%c5_i32] : memref<9x!tpu.dma_semaphore, #tpu.memory_space<semaphore_mem>> -> memref<1x!tpu.dma_semaphore, #tpu.memory_space<semaphore_mem>>
    %23 = tpu.memref_squeeze %22 : memref<1x!tpu.dma_semaphore, #tpu.memory_space<semaphore_mem>> -> memref<!tpu.dma_semaphore, #tpu.memory_space<semaphore_mem>>
    tpu.enqueue_dma source(%20 : memref<160x256xf32, #tpu.memory_space<hbm>>) target(%21 : memref<160x256xf32, #tpu.memory_space<hbm>>) target_semaphore(%23 : memref<!tpu.dma_semaphore, #tpu.memory_space<semaphore_mem>>)
    %c6_i32 = arith.constant 6 : i32
    %c1024_i32 = arith.constant 1024 : i32
    %c0_i32_19 = arith.constant 0 : i32
    %24 = tpu.memref_slice %arg0[%c1024_i32, %c0_i32_19] : memref<1280x256xf32, #tpu.memory_space<hbm>> -> memref<88x256xf32, #tpu.memory_space<hbm>>
    %c0_i32_20 = arith.constant 0 : i32
    %c0_i32_21 = arith.constant 0 : i32
    %25 = tpu.memref_slice %arg3[%c0_i32_20, %c0_i32_21] : memref<256x256xf32, #tpu.memory_space<hbm>> -> memref<88x256xf32, #tpu.memory_space<hbm>>
    %26 = tpu.memref_slice %arg4[%c6_i32] : memref<9x!tpu.dma_semaphore, #tpu.memory_space<semaphore_mem>> -> memref<1x!tpu.dma_semaphore, #tpu.memory_space<semaphore_mem>>
    %27 = tpu.memref_squeeze %26 : memref<1x!tpu.dma_semaphore, #tpu.memory_space<semaphore_mem>> -> memref<!tpu.dma_semaphore, #tpu.memory_space<semaphore_mem>>
    tpu.enqueue_dma source(%24 : memref<88x256xf32, #tpu.memory_space<hbm>>) target(%25 : memref<88x256xf32, #tpu.memory_space<hbm>>) target_semaphore(%27 : memref<!tpu.dma_semaphore, #tpu.memory_space<semaphore_mem>>)
    %c7_i32 = arith.constant 7 : i32
    %c1112_i32 = arith.constant 1112 : i32
    %c0_i32_22 = arith.constant 0 : i32
    %28 = tpu.memref_slice %arg0[%c1112_i32, %c0_i32_22] : memref<1280x256xf32, #tpu.memory_space<hbm>> -> memref<88x256xf32, #tpu.memory_space<hbm>>
    %c88_i32 = arith.constant 88 : i32
    %c0_i32_23 = arith.constant 0 : i32
    %29 = tpu.memref_slice %arg3[%c88_i32, %c0_i32_23] : memref<256x256xf32, #tpu.memory_space<hbm>> -> memref<88x256xf32, #tpu.memory_space<hbm>>
    %30 = tpu.memref_slice %arg4[%c7_i32] : memref<9x!tpu.dma_semaphore, #tpu.memory_space<semaphore_mem>> -> memref<1x!tpu.dma_semaphore, #tpu.memory_space<semaphore_mem>>
    %31 = tpu.memref_squeeze %30 : memref<1x!tpu.dma_semaphore, #tpu.memory_space<semaphore_mem>> -> memref<!tpu.dma_semaphore, #tpu.memory_space<semaphore_mem>>
    tpu.enqueue_dma source(%28 : memref<88x256xf32, #tpu.memory_space<hbm>>) target(%29 : memref<88x256xf32, #tpu.memory_space<hbm>>) target_semaphore(%31 : memref<!tpu.dma_semaphore, #tpu.memory_space<semaphore_mem>>)
    %c8_i32 = arith.constant 8 : i32
    %c1200_i32 = arith.constant 1200 : i32
    %c0_i32_24 = arith.constant 0 : i32
    %32 = tpu.memref_slice %arg0[%c1200_i32, %c0_i32_24] : memref<1280x256xf32, #tpu.memory_space<hbm>> -> memref<80x256xf32, #tpu.memory_space<hbm>>
    %c176_i32_25 = arith.constant 176 : i32
    %c0_i32_26 = arith.constant 0 : i32
    %33 = tpu.memref_slice %arg3[%c176_i32_25, %c0_i32_26] : memref<256x256xf32, #tpu.memory_space<hbm>> -> memref<80x256xf32, #tpu.memory_space<hbm>>
    %34 = tpu.memref_slice %arg4[%c8_i32] : memref<9x!tpu.dma_semaphore, #tpu.memory_space<semaphore_mem>> -> memref<1x!tpu.dma_semaphore, #tpu.memory_space<semaphore_mem>>
    %35 = tpu.memref_squeeze %34 : memref<1x!tpu.dma_semaphore, #tpu.memory_space<semaphore_mem>> -> memref<!tpu.dma_semaphore, #tpu.memory_space<semaphore_mem>>
    tpu.enqueue_dma source(%32 : memref<80x256xf32, #tpu.memory_space<hbm>>) target(%33 : memref<80x256xf32, #tpu.memory_space<hbm>>) target_semaphore(%35 : memref<!tpu.dma_semaphore, #tpu.memory_space<semaphore_mem>>)
    %c0_i32_27 = arith.constant 0 : i32
    %c0_i32_28 = arith.constant 0 : i32
    %c0_i32_29 = arith.constant 0 : i32
    %36 = tpu.memref_slice %arg0[%c0_i32_28, %c0_i32_29] : memref<1280x256xf32, #tpu.memory_space<hbm>> -> memref<176x256xf32, #tpu.memory_space<hbm>>
    %c0_i32_30 = arith.constant 0 : i32
    %c0_i32_31 = arith.constant 0 : i32
    %37 = tpu.memref_slice %arg1[%c0_i32_30, %c0_i32_31] : memref<512x256xf32, #tpu.memory_space<hbm>> -> memref<176x256xf32, #tpu.memory_space<hbm>>
    %38 = tpu.memref_slice %arg4[%c0_i32_27] : memref<9x!tpu.dma_semaphore, #tpu.memory_space<semaphore_mem>> -> memref<1x!tpu.dma_semaphore, #tpu.memory_space<semaphore_mem>>
    %39 = tpu.memref_squeeze %38 : memref<1x!tpu.dma_semaphore, #tpu.memory_space<semaphore_mem>> -> memref<!tpu.dma_semaphore, #tpu.memory_space<semaphore_mem>>
    tpu.wait_dma2 semaphore(%39 : memref<!tpu.dma_semaphore, #tpu.memory_space<semaphore_mem>>) src(%36 : memref<176x256xf32, #tpu.memory_space<hbm>>) dst(%37 : memref<176x256xf32, #tpu.memory_space<hbm>>)
    %c1_i32_32 = arith.constant 1 : i32
    %c176_i32_33 = arith.constant 176 : i32
    %c0_i32_34 = arith.constant 0 : i32
    %40 = tpu.memref_slice %arg0[%c176_i32_33, %c0_i32_34] : memref<1280x256xf32, #tpu.memory_space<hbm>> -> memref<176x256xf32, #tpu.memory_space<hbm>>
    %c176_i32_35 = arith.constant 176 : i32
    %c0_i32_36 = arith.constant 0 : i32
    %41 = tpu.memref_slice %arg1[%c176_i32_35, %c0_i32_36] : memref<512x256xf32, #tpu.memory_space<hbm>> -> memref<176x256xf32, #tpu.memory_space<hbm>>
    %42 = tpu.memref_slice %arg4[%c1_i32_32] : memref<9x!tpu.dma_semaphore, #tpu.memory_space<semaphore_mem>> -> memref<1x!tpu.dma_semaphore, #tpu.memory_space<semaphore_mem>>
    %43 = tpu.memref_squeeze %42 : memref<1x!tpu.dma_semaphore, #tpu.memory_space<semaphore_mem>> -> memref<!tpu.dma_semaphore, #tpu.memory_space<semaphore_mem>>
    tpu.wait_dma2 semaphore(%43 : memref<!tpu.dma_semaphore, #tpu.memory_space<semaphore_mem>>) src(%40 : memref<176x256xf32, #tpu.memory_space<hbm>>) dst(%41 : memref<176x256xf32, #tpu.memory_space<hbm>>)
    %c2_i32_37 = arith.constant 2 : i32
    %c352_i32_38 = arith.constant 352 : i32
    %c0_i32_39 = arith.constant 0 : i32
    %44 = tpu.memref_slice %arg0[%c352_i32_38, %c0_i32_39] : memref<1280x256xf32, #tpu.memory_space<hbm>> -> memref<160x256xf32, #tpu.memory_space<hbm>>
    %c352_i32_40 = arith.constant 352 : i32
    %c0_i32_41 = arith.constant 0 : i32
    %45 = tpu.memref_slice %arg1[%c352_i32_40, %c0_i32_41] : memref<512x256xf32, #tpu.memory_space<hbm>> -> memref<160x256xf32, #tpu.memory_space<hbm>>
    %46 = tpu.memref_slice %arg4[%c2_i32_37] : memref<9x!tpu.dma_semaphore, #tpu.memory_space<semaphore_mem>> -> memref<1x!tpu.dma_semaphore, #tpu.memory_space<semaphore_mem>>
    %47 = tpu.memref_squeeze %46 : memref<1x!tpu.dma_semaphore, #tpu.memory_space<semaphore_mem>> -> memref<!tpu.dma_semaphore, #tpu.memory_space<semaphore_mem>>
    tpu.wait_dma2 semaphore(%47 : memref<!tpu.dma_semaphore, #tpu.memory_space<semaphore_mem>>) src(%44 : memref<160x256xf32, #tpu.memory_space<hbm>>) dst(%45 : memref<160x256xf32, #tpu.memory_space<hbm>>)
    %c3_i32_42 = arith.constant 3 : i32
    %c512_i32_43 = arith.constant 512 : i32
    %c0_i32_44 = arith.constant 0 : i32
    %48 = tpu.memref_slice %arg0[%c512_i32_43, %c0_i32_44] : memref<1280x256xf32, #tpu.memory_space<hbm>> -> memref<176x256xf32, #tpu.memory_space<hbm>>
    %c0_i32_45 = arith.constant 0 : i32
    %c0_i32_46 = arith.constant 0 : i32
    %49 = tpu.memref_slice %arg2[%c0_i32_45, %c0_i32_46] : memref<512x256xf32, #tpu.memory_space<hbm>> -> memref<176x256xf32, #tpu.memory_space<hbm>>
    %50 = tpu.memref_slice %arg4[%c3_i32_42] : memref<9x!tpu.dma_semaphore, #tpu.memory_space<semaphore_mem>> -> memref<1x!tpu.dma_semaphore, #tpu.memory_space<semaphore_mem>>
    %51 = tpu.memref_squeeze %50 : memref<1x!tpu.dma_semaphore, #tpu.memory_space<semaphore_mem>> -> memref<!tpu.dma_semaphore, #tpu.memory_space<semaphore_mem>>
    tpu.wait_dma2 semaphore(%51 : memref<!tpu.dma_semaphore, #tpu.memory_space<semaphore_mem>>) src(%48 : memref<176x256xf32, #tpu.memory_space<hbm>>) dst(%49 : memref<176x256xf32, #tpu.memory_space<hbm>>)
    %c4_i32_47 = arith.constant 4 : i32
    %c688_i32_48 = arith.constant 688 : i32
    %c0_i32_49 = arith.constant 0 : i32
    %52 = tpu.memref_slice %arg0[%c688_i32_48, %c0_i32_49] : memref<1280x256xf32, #tpu.memory_space<hbm>> -> memref<176x256xf32, #tpu.memory_space<hbm>>
    %c176_i32_50 = arith.constant 176 : i32
    %c0_i32_51 = arith.constant 0 : i32
    %53 = tpu.memref_slice %arg2[%c176_i32_50, %c0_i32_51] : memref<512x256xf32, #tpu.memory_space<hbm>> -> memref<176x256xf32, #tpu.memory_space<hbm>>
    %54 = tpu.memref_slice %arg4[%c4_i32_47] : memref<9x!tpu.dma_semaphore, #tpu.memory_space<semaphore_mem>> -> memref<1x!tpu.dma_semaphore, #tpu.memory_space<semaphore_mem>>
    %55 = tpu.memref_squeeze %54 : memref<1x!tpu.dma_semaphore, #tpu.memory_space<semaphore_mem>> -> memref<!tpu.dma_semaphore, #tpu.memory_space<semaphore_mem>>
    tpu.wait_dma2 semaphore(%55 : memref<!tpu.dma_semaphore, #tpu.memory_space<semaphore_mem>>) src(%52 : memref<176x256xf32, #tpu.memory_space<hbm>>) dst(%53 : memref<176x256xf32, #tpu.memory_space<hbm>>)
    %c5_i32_52 = arith.constant 5 : i32
    %c864_i32_53 = arith.constant 864 : i32
    %c0_i32_54 = arith.constant 0 : i32
    %56 = tpu.memref_slice %arg0[%c864_i32_53, %c0_i32_54] : memref<1280x256xf32, #tpu.memory_space<hbm>> -> memref<160x256xf32, #tpu.memory_space<hbm>>
    %c352_i32_55 = arith.constant 352 : i32
    %c0_i32_56 = arith.constant 0 : i32
    %57 = tpu.memref_slice %arg2[%c352_i32_55, %c0_i32_56] : memref<512x256xf32, #tpu.memory_space<hbm>> -> memref<160x256xf32, #tpu.memory_space<hbm>>
    %58 = tpu.memref_slice %arg4[%c5_i32_52] : memref<9x!tpu.dma_semaphore, #tpu.memory_space<semaphore_mem>> -> memref<1x!tpu.dma_semaphore, #tpu.memory_space<semaphore_mem>>
    %59 = tpu.memref_squeeze %58 : memref<1x!tpu.dma_semaphore, #tpu.memory_space<semaphore_mem>> -> memref<!tpu.dma_semaphore, #tpu.memory_space<semaphore_mem>>
    tpu.wait_dma2 semaphore(%59 : memref<!tpu.dma_semaphore, #tpu.memory_space<semaphore_mem>>) src(%56 : memref<160x256xf32, #tpu.memory_space<hbm>>) dst(%57 : memref<160x256xf32, #tpu.memory_space<hbm>>)
    %c6_i32_57 = arith.constant 6 : i32
    %c1024_i32_58 = arith.constant 1024 : i32
    %c0_i32_59 = arith.constant 0 : i32
    %60 = tpu.memref_slice %arg0[%c1024_i32_58, %c0_i32_59] : memref<1280x256xf32, #tpu.memory_space<hbm>> -> memref<88x256xf32, #tpu.memory_space<hbm>>
    %c0_i32_60 = arith.constant 0 : i32
    %c0_i32_61 = arith.constant 0 : i32
    %61 = tpu.memref_slice %arg3[%c0_i32_60, %c0_i32_61] : memref<256x256xf32, #tpu.memory_space<hbm>> -> memref<88x256xf32, #tpu.memory_space<hbm>>
    %62 = tpu.memref_slice %arg4[%c6_i32_57] : memref<9x!tpu.dma_semaphore, #tpu.memory_space<semaphore_mem>> -> memref<1x!tpu.dma_semaphore, #tpu.memory_space<semaphore_mem>>
    %63 = tpu.memref_squeeze %62 : memref<1x!tpu.dma_semaphore, #tpu.memory_space<semaphore_mem>> -> memref<!tpu.dma_semaphore, #tpu.memory_space<semaphore_mem>>
    tpu.wait_dma2 semaphore(%63 : memref<!tpu.dma_semaphore, #tpu.memory_space<semaphore_mem>>) src(%60 : memref<88x256xf32, #tpu.memory_space<hbm>>) dst(%61 : memref<88x256xf32, #tpu.memory_space<hbm>>)
    %c7_i32_62 = arith.constant 7 : i32
    %c1112_i32_63 = arith.constant 1112 : i32
    %c0_i32_64 = arith.constant 0 : i32
    %64 = tpu.memref_slice %arg0[%c1112_i32_63, %c0_i32_64] : memref<1280x256xf32, #tpu.memory_space<hbm>> -> memref<88x256xf32, #tpu.memory_space<hbm>>
    %c88_i32_65 = arith.constant 88 : i32
    %c0_i32_66 = arith.constant 0 : i32
    %65 = tpu.memref_slice %arg3[%c88_i32_65, %c0_i32_66] : memref<256x256xf32, #tpu.memory_space<hbm>> -> memref<88x256xf32, #tpu.memory_space<hbm>>
    %66 = tpu.memref_slice %arg4[%c7_i32_62] : memref<9x!tpu.dma_semaphore, #tpu.memory_space<semaphore_mem>> -> memref<1x!tpu.dma_semaphore, #tpu.memory_space<semaphore_mem>>
    %67 = tpu.memref_squeeze %66 : memref<1x!tpu.dma_semaphore, #tpu.memory_space<semaphore_mem>> -> memref<!tpu.dma_semaphore, #tpu.memory_space<semaphore_mem>>
    tpu.wait_dma2 semaphore(%67 : memref<!tpu.dma_semaphore, #tpu.memory_space<semaphore_mem>>) src(%64 : memref<88x256xf32, #tpu.memory_space<hbm>>) dst(%65 : memref<88x256xf32, #tpu.memory_space<hbm>>)
    %c8_i32_67 = arith.constant 8 : i32
    %c1200_i32_68 = arith.constant 1200 : i32
    %c0_i32_69 = arith.constant 0 : i32
    %68 = tpu.memref_slice %arg0[%c1200_i32_68, %c0_i32_69] : memref<1280x256xf32, #tpu.memory_space<hbm>> -> memref<80x256xf32, #tpu.memory_space<hbm>>
    %c176_i32_70 = arith.constant 176 : i32
    %c0_i32_71 = arith.constant 0 : i32
    %69 = tpu.memref_slice %arg3[%c176_i32_70, %c0_i32_71] : memref<256x256xf32, #tpu.memory_space<hbm>> -> memref<80x256xf32, #tpu.memory_space<hbm>>
    %70 = tpu.memref_slice %arg4[%c8_i32_67] : memref<9x!tpu.dma_semaphore, #tpu.memory_space<semaphore_mem>> -> memref<1x!tpu.dma_semaphore, #tpu.memory_space<semaphore_mem>>
    %71 = tpu.memref_squeeze %70 : memref<1x!tpu.dma_semaphore, #tpu.memory_space<semaphore_mem>> -> memref<!tpu.dma_semaphore, #tpu.memory_space<semaphore_mem>>
    tpu.wait_dma2 semaphore(%71 : memref<!tpu.dma_semaphore, #tpu.memory_space<semaphore_mem>>) src(%68 : memref<80x256xf32, #tpu.memory_space<hbm>>) dst(%69 : memref<80x256xf32, #tpu.memory_space<hbm>>)
    return
  }
}

</mosaic_0001>

<llo_original>
// kernel: tpu_custom_call.1
$region0: #{tpu_custom_call.1}
  #allocation0 [shape = 'u32[]', space=smem, size = 0x4, offset = 0x4, fixed_abs, tag = 'smem constant byte address 0x4 - core index']
  #allocation1 [shape = 'u32[144,128]{1,0:T(1,128)}', space=vmem, size = 0x12000, scoped, tag = 'internal scratch']
  #allocation2 [shape = 's32[9]{0}', space=sflag, size = 0x24, scoped, tag = 'scratch operand']
  #allocation3 [shape = 's32[]', space=sflag, size = 0x4, offset = 0, fixed_abs, tag = 'sflag constant byte address 0x0 - dummy sync flag']
  #allocation4 [shape = 'u32[0]{0}', space=smem, size = 0, offset = 0, fixed_abs, tag = 'smem constant byte address 0x0 - null']
  #allocation5 [shape = 's32[]', space=sflag, size = 0x4, offset = 0, fixed_abs, tag = 'sflag constant byte address 0x0 - dummy sync flag']
  #allocation6 [shape = 'u32[0]{0}', space=smem, size = 0, offset = 0, fixed_abs, tag = 'smem constant byte address 0x0 - null']
  #allocation7 [shape = 's32[]', space=sflag, size = 0x4, offset = 0, fixed_abs, tag = 'sflag constant byte address 0x0 - dummy sync flag']
  #allocation8 [shape = 'u32[0]{0}', space=smem, size = 0, offset = 0, fixed_abs, tag = 'smem constant byte address 0x0 - null']
  #allocation9 [shape = 's32[]', space=sflag, size = 0x4, offset = 0, fixed_abs, tag = 'sflag constant byte address 0x0 - dummy sync flag']
  #allocation10 [shape = 'u32[0]{0}', space=smem, size = 0, offset = 0, fixed_abs, tag = 'smem constant byte address 0x0 - null']
  #allocation11 [shape = 's32[]', space=sflag, size = 0x4, offset = 0, fixed_abs, tag = 'sflag constant byte address 0x0 - dummy sync flag']
  #allocation12 [shape = 'u32[0]{0}', space=smem, size = 0, offset = 0, fixed_abs, tag = 'smem constant byte address 0x0 - null']
  #allocation13 [shape = 's32[]', space=sflag, size = 0x4, offset = 0, fixed_abs, tag = 'sflag constant byte address 0x0 - dummy sync flag']
  #allocation14 [shape = 'u32[0]{0}', space=smem, size = 0, offset = 0, fixed_abs, tag = 'smem constant byte address 0x0 - null']
  #allocation15 [shape = 's32[]', space=sflag, size = 0x4, offset = 0, fixed_abs, tag = 'sflag constant byte address 0x0 - dummy sync flag']
  #allocation16 [shape = 'u32[0]{0}', space=smem, size = 0, offset = 0, fixed_abs, tag = 'smem constant byte address 0x0 - null']
  #allocation17 [shape = 's32[]', space=sflag, size = 0x4, offset = 0, fixed_abs, tag = 'sflag constant byte address 0x0 - dummy sync flag']
  #allocation18 [shape = 'u32[0]{0}', space=smem, size = 0, offset = 0, fixed_abs, tag = 'smem constant byte address 0x0 - null']
  #allocation19 [shape = 's32[]', space=sflag, size = 0x4, offset = 0, fixed_abs, tag = 'sflag constant byte address 0x0 - dummy sync flag']
  #allocation20 [shape = 'u32[0]{0}', space=smem, size = 0, offset = 0, fixed_abs, tag = 'smem constant byte address 0x0 - null']
  %s0 = inlined_call_operand.hbm [shape: f32[1280,256], index: 0, kind: input, shape index: {}]
  %s1 = inlined_call_operand.hbm [shape: f32[512,256], index: 1, kind: output, shape index: {0}]
  %s2 = inlined_call_operand.hbm [shape: f32[512,256], index: 2, kind: output, shape index: {1}]
  %s3 = inlined_call_operand.hbm [shape: f32[256,256], index: 3, kind: output, shape index: {2}]
  %4 = xla_tuple %s1, %s2, %s3
  %s5 = sld [smem:[#allocation0]]
  $region2: #{tpu_custom_call.1} parent=0
    _
  %s7 = ssub.s32 1, %s5
  %s8 = scalar_select 0, %s7, %s5
  %s10 = sshll.u32 1, 14
  %s11 = sxor.u32 4294967295, %s10
  %s14 = sshll.u32 3, 24
  %s15 = sxor.u32 4294967295, %s14
  %s16 = sand.u32 0, %s15
  %s18 = sor.u32 %s16, 0
  %21 = dma.general %s0, 5632, %s1, [#allocation2], [#allocation3], [#allocation4], %s18, 0
  %s22 = scalar_lea.hbm %s0, 5632
  %s23 = scalar_lea.hbm %s1, 5632
  %s24 = scalar_lea.sflag [#allocation2], 1
  %s26 = sshll.u32 1, 14
  %s27 = sxor.u32 4294967295, %s26
  %s30 = sshll.u32 3, 24
  %s31 = sxor.u32 4294967295, %s30
  %s32 = sand.u32 0, %s31
  %s34 = sor.u32 %s32, 0
  %37 = dma.general %s22, 5632, %s23, %s24, [#allocation5], [#allocation6], %s34, 0
  %s38 = scalar_lea.hbm %s0, 11264
  %s39 = scalar_lea.hbm %s1, 11264
  %s40 = scalar_lea.sflag [#allocation2], 2
  %s42 = sshll.u32 1, 14
  %s43 = sxor.u32 4294967295, %s42
  %s46 = sshll.u32 3, 24
  %s47 = sxor.u32 4294967295, %s46
  %s48 = sand.u32 0, %s47
  %s50 = sor.u32 %s48, 0
  %53 = dma.general %s38, 5120, %s39, %s40, [#allocation7], [#allocation8], %s50, 0
  %s54 = scalar_lea.hbm %s0, 16384
  %s55 = scalar_lea.sflag [#allocation2], 3
  %s57 = sshll.u32 1, 14
  %s58 = sxor.u32 4294967295, %s57
  %s61 = sshll.u32 3, 24
  %s62 = sxor.u32 4294967295, %s61
  %s63 = sand.u32 0, %s62
  %s65 = sor.u32 %s63, 0
  %68 = dma.general %s54, 5632, %s2, %s55, [#allocation9], [#allocation10], %s65, 0
  %s69 = scalar_lea.hbm %s0, 22016
  %s70 = scalar_lea.hbm %s2, 5632
  %s71 = scalar_lea.sflag [#allocation2], 4
  %s73 = sshll.u32 1, 14
  %s74 = sxor.u32 4294967295, %s73
  %s77 = sshll.u32 3, 24
  %s78 = sxor.u32 4294967295, %s77
  %s79 = sand.u32 0, %s78
  %s81 = sor.u32 %s79, 0
  %84 = dma.general %s69, 5632, %s70, %s71, [#allocation11], [#allocation12], %s81, 0
  %s85 = scalar_lea.hbm %s0, 27648
  %s86 = scalar_lea.hbm %s2, 11264
  %s87 = scalar_lea.sflag [#allocation2], 5
  %s89 = sshll.u32 1, 14
  %s90 = sxor.u32 4294967295, %s89
  %s93 = sshll.u32 3, 24
  %s94 = sxor.u32 4294967295, %s93
  %s95 = sand.u32 0, %s94
  %s97 = sor.u32 %s95, 0
  %100 = dma.general %s85, 5120, %s86, %s87, [#allocation13], [#allocation14], %s97, 0
  %s101 = scalar_lea.hbm %s0, 32768
  %s102 = scalar_lea.sflag [#allocation2], 6
  %s104 = sshll.u32 1, 14
  %s105 = sxor.u32 4294967295, %s104
  %s108 = sshll.u32 3, 24
  %s109 = sxor.u32 4294967295, %s108
  %s110 = sand.u32 0, %s109
  %s112 = sor.u32 %s110, 0
  %115 = dma.general %s101, 2816, %s3, %s102, [#allocation15], [#allocation16], %s112, 0
  %s116 = scalar_lea.hbm %s0, 35584
  %s117 = scalar_lea.hbm %s3, 2816
  %s118 = scalar_lea.sflag [#allocation2], 7
  %s120 = sshll.u32 1, 14
  %s121 = sxor.u32 4294967295, %s120
  %s124 = sshll.u32 3, 24
  %s125 = sxor.u32 4294967295, %s124
  %s126 = sand.u32 0, %s125
  %s128 = sor.u32 %s126, 0
  %131 = dma.general %s116, 2816, %s117, %s118, [#allocation17], [#allocation18], %s128, 0
  %s132 = scalar_lea.hbm %s0, 38400
  %s133 = scalar_lea.hbm %s3, 5632
  %s134 = scalar_lea.sflag [#allocation2], 8
  %s136 = sshll.u32 1, 14
  %s137 = sxor.u32 4294967295, %s136
  %s140 = sshll.u32 3, 24
  %s141 = sxor.u32 4294967295, %s140
  %s142 = sand.u32 0, %s141
  %s144 = sor.u32 %s142, 0
  %147 = dma.general %s132, 2560, %s133, %s134, [#allocation19], [#allocation20], %s144, 0
  %s148 = smul.u32 8, 22
  %s149 = smul.u32 %s148, 2
  %s150 = sshll.u32 %s149, 4
  %151 = dma.done [#allocation2], %s150
  %s152 = sshll.u32 %s149, 4
  %153 = dma.done %s24, %s152
  %s154 = smul.u32 8, 20
  %s155 = smul.u32 %s154, 2
  %s156 = sshll.u32 %s155, 4
  %157 = dma.done %s40, %s156
  %s158 = sshll.u32 %s149, 4
  %159 = dma.done %s55, %s158
  %s160 = sshll.u32 %s149, 4
  %161 = dma.done %s71, %s160
  %s162 = sshll.u32 %s155, 4
  %163 = dma.done %s87, %s162
  %s164 = smul.u32 8, 11
  %s165 = smul.u32 %s164, 2
  %s166 = sshll.u32 %s165, 4
  %167 = dma.done %s102, %s166
  %s168 = sshll.u32 %s165, 4
  %169 = dma.done %s118, %s168
  %s170 = smul.u32 8, 10
  %s171 = smul.u32 %s170, 2
  %s172 = sshll.u32 %s171, 4
  %173 = dma.done %s134, %s172
  %174 = vsyncmov [#allocation2]
  %s175 = vpop.sfrf %174
  %p176 = scmp.eq.s32.totalorder %s175, 0
  %p177 = pneg %p176
  %179 = shalt.err (%p177)
  %s180 = scalar_lea.sflag [#allocation2], 1
  %181 = vsyncmov %s180
  %s182 = vpop.sfrf %181
  %p183 = scmp.eq.s32.totalorder %s182, 0
  %p184 = pneg %p183
  %186 = shalt.err (%p184)
  %s187 = scalar_lea.sflag [#allocation2], 2
  %188 = vsyncmov %s187
  %s189 = vpop.sfrf %188
  %p190 = scmp.eq.s32.totalorder %s189, 0
  %p191 = pneg %p190
  %193 = shalt.err (%p191)
  %s194 = scalar_lea.sflag [#allocation2], 3
  %195 = vsyncmov %s194
  %s196 = vpop.sfrf %195
  %p197 = scmp.eq.s32.totalorder %s196, 0
  %p198 = pneg %p197
  %200 = shalt.err (%p198)
  %s201 = scalar_lea.sflag [#allocation2], 4
  %202 = vsyncmov %s201
  %s203 = vpop.sfrf %202
  %p204 = scmp.eq.s32.totalorder %s203, 0
  %p205 = pneg %p204
  %207 = shalt.err (%p205)
  %s208 = scalar_lea.sflag [#allocation2], 5
  %209 = vsyncmov %s208
  %s210 = vpop.sfrf %209
  %p211 = scmp.eq.s32.totalorder %s210, 0
  %p212 = pneg %p211
  %214 = shalt.err (%p212)
  %s215 = scalar_lea.sflag [#allocation2], 6
  %216 = vsyncmov %s215
  %s217 = vpop.sfrf %216
  %p218 = scmp.eq.s32.totalorder %s217, 0
  %p219 = pneg %p218
  %221 = shalt.err (%p219)
  %s222 = scalar_lea.sflag [#allocation2], 7
  %223 = vsyncmov %s222
  %s224 = vpop.sfrf %223
  %p225 = scmp.eq.s32.totalorder %s224, 0
  %p226 = pneg %p225
  %228 = shalt.err (%p226)
  %s229 = scalar_lea.sflag [#allocation2], 8
  %230 = vsyncmov %s229
  %s231 = vpop.sfrf %230
  %p232 = scmp.eq.s32.totalorder %s231, 0
  %p233 = pneg %p232
  %235 = shalt.err (%p233)

</llo_original>
